<compile_context>
chip_gen: v6e
topology: v6e:2x2x1
jax: 0.10.0
libtpu: 0.0.40
codegen_flags: <defaults>
</compile_context>

<pallas_src>
import functools

import jax
import jax.numpy as jnp
from jax import lax
from jax.experimental import pallas as pl
from jax.experimental.pallas import tpu as pltpu


# ----------------------------------------------------------------------------
# Kernel A: 1x1 conv + BN + ReLU   (tiled matmul with fused epilogue)
# ----------------------------------------------------------------------------
def _mm_bn_relu_kernel(x_ref, w_ref, sb_ref, o_ref):
    acc = jnp.dot(x_ref[...], w_ref[...], preferred_element_type=jnp.float32)
    sb = sb_ref[...]
    o_ref[...] = jnp.maximum(acc * sb[0:1, :] + sb[1:2, :], 0.0).astype(o_ref.dtype)


def _pick_tm(M):
    """Largest M tile giving >=2 grid steps when possible (feeds both v7x TCs / pipelines)."""
    for tm in (512, 256, 128, 64):
        if M % tm == 0 and M // tm >= 2:
            return tm
    if M <= 512:
        return M                # single block == full array dims
    return 512                  # ragged last block handled by pl.cdiv grid


def pointwise_conv_bn_relu(x, w, sb, *, out_dtype=jnp.bfloat16):
    """x: (M, K) bf16, w: (K, N) bf16, sb: (2, N) f32  ->  relu(x @ w * scale + bias)."""
    M, K = x.shape
    N = w.shape[1]
    tm = _pick_tm(M)
    return pl.pallas_call(
        _mm_bn_relu_kernel,
        out_shape=jax.ShapeDtypeStruct((M, N), out_dtype),
        grid=(pl.cdiv(M, tm),),
        in_specs=[
            pl.BlockSpec((tm, K), lambda i: (i, 0)),
            pl.BlockSpec((K, N), lambda i: (0, 0)),
            pl.BlockSpec((2, N), lambda i: (0, 0)),
        ],
        out_specs=pl.BlockSpec((tm, N), lambda i: (i, 0)),
        compiler_params=pltpu.CompilerParams(dimension_semantics=("parallel",)),
    )(x, w, sb)


# ----------------------------------------------------------------------------
# Kernel B: conv2(3x3)+bn2+relu + conv3(1x1)+bn3 + shortcut + add + relu (fused)
# ----------------------------------------------------------------------------
def _conv2_bn_relu(ph_ref, w2_ref, sb2_ref, *, s, Ho, Wo, Wq):
    """3x3/stride-s conv + BN + ReLU for one image, from its stride-phase rows.

    ph_ref: (1, s*s, Lpad, Cin) -- zero-padded activation split into s*s stride phases, each
            flattened row-major over (Hq, Wq) and zero-padded to Lpad rows.
    Tap (i, j) reads phase (i%s)*s + (j%s) shifted by d = (i//s)*Wq + (j//s) rows: a plain
    sublane-shifted row window, bf16 end-to-end into the MXU, accumulated in f32 in the padded
    (Ho, Wq) geometry.  The halo columns are cropped exactly once at the end.
    """
    P = w2_ref.shape[-1]
    L = Ho * Wq
    acc = jnp.zeros((L, P), jnp.float32)
    for i in range(3):
        for j in range(3):
            p = (i % s) * s + (j % s)
            d = (i // s) * Wq + (j // s)
            acc = acc + jnp.dot(ph_ref[0, p, d:d + L, :], w2_ref[3 * i + j],
                                preferred_element_type=jnp.float32)
    sb = sb2_ref[...]
    h2 = jnp.maximum(acc * sb[0:1, :] + sb[1:2, :], 0.0).astype(jnp.bfloat16)
    return h2.reshape(Ho, Wq, P)[:, :Wo, :].reshape(Ho * Wo, P)    # crop halo cols (once)


def _tail_id_kernel(ph_ref, w2_ref, sb2_ref, w3_ref, sb3_ref, res_ref, o_ref,
                    *, s, Ho, Wo, Wq):
    h2 = _conv2_bn_relu(ph_ref, w2_ref, sb2_ref, s=s, Ho=Ho, Wo=Wo, Wq=Wq)
    out = jnp.dot(h2, w3_ref[...], preferred_element_type=jnp.float32)
    sb3 = sb3_ref[...]
    out = out * sb3[0:1, :] + sb3[1:2, :] + res_ref[0].astype(jnp.float32)
    o_ref[0] = jnp.maximum(out, 0.0).astype(o_ref.dtype)


def _tail_proj_kernel(ph_ref, w2_ref, sb2_ref, w3_ref, sb3_ref,
                      xs_ref, wsc_ref, sbsc_ref, o_ref, *, s, Ho, Wo, Wq):
    h2 = _conv2_bn_relu(ph_ref, w2_ref, sb2_ref, s=s, Ho=Ho, Wo=Wo, Wq=Wq)
    out = jnp.dot(h2, w3_ref[...], preferred_element_type=jnp.float32)
    sb3 = sb3_ref[...]
    out = out * sb3[0:1, :] + sb3[1:2, :]
    sc = jnp.dot(xs_ref[0], wsc_ref[...], preferred_element_type=jnp.float32)
    sbs = sbsc_ref[...]
    out = out + sc * sbs[0:1, :] + sbs[1:2, :]
    o_ref[0] = jnp.maximum(out, 0.0).astype(o_ref.dtype)


def conv2_conv3_shortcut(ph, w2, sb2, w3, sb3, shortcut, *, s, Ho, Wo, Wq,
                         out_dtype=jnp.bfloat16):
    B, nph, Lpad, P = ph.shape
    Cexp = w3.shape[1]
    Mo = Ho * Wo
    common_in = [
        pl.BlockSpec((1, nph, Lpad, P), lambda b: (b, 0, 0, 0)),
        pl.BlockSpec((9, P, P), lambda b: (0, 0, 0)),
        pl.BlockSpec((2, P), lambda b: (0, 0)),
        pl.BlockSpec((P, Cexp), lambda b: (0, 0)),
        pl.BlockSpec((2, Cexp), lambda b: (0, 0)),
    ]
    out_spec = pl.BlockSpec((1, Mo, Cexp), lambda b: (b, 0, 0))
    out_shape = jax.ShapeDtypeStruct((B, Mo, Cexp), out_dtype)
    cparams = pltpu.CompilerParams(dimension_semantics=("parallel",))

    if shortcut[0] == "proj":
        _, xs, wsc, sbsc = shortcut
        Cin = xs.shape[-1]
        kernel = functools.partial(_tail_proj_kernel, s=s, Ho=Ho, Wo=Wo, Wq=Wq)
        return pl.pallas_call(
            kernel, out_shape=out_shape, grid=(B,),
            in_specs=common_in + [
                pl.BlockSpec((1, Mo, Cin), lambda b: (b, 0, 0)),
                pl.BlockSpec((Cin, Cexp), lambda b: (0, 0)),
                pl.BlockSpec((2, Cexp), lambda b: (0, 0)),
            ],
            out_specs=out_spec, compiler_params=cparams,
        )(ph, w2, sb2, w3, sb3, xs, wsc, sbsc)
    else:
        _, res = shortcut
        kernel = functools.partial(_tail_id_kernel, s=s, Ho=Ho, Wo=Wo, Wq=Wq)
        return pl.pallas_call(
            kernel, out_shape=out_shape, grid=(B,),
            in_specs=common_in + [pl.BlockSpec((1, Mo, Cexp), lambda b: (b, 0, 0))],
            out_specs=out_spec, compiler_params=cparams,
        )(ph, w2, sb2, w3, sb3, res)


# ----------------------------------------------------------------------------
# Wrapper-side prep
# ----------------------------------------------------------------------------
def _stride_phases(h_nhwc, *, s, Hq, Wq):
    """Zero-pad (pad=1, completed bottom/right so odd dims are safe) and split into the s*s
    stride-phase views, each flattened row-major to 2-D rows.  The phases tile the padded
    activation exactly, so there is no data duplication beyond the 1-pixel halo."""
    B, H, W, C = h_nhwc.shape
    Hp = max(H + 2, Hq * s)
    Wp = max(W + 2, Wq * s)
    xp = jnp.pad(h_nhwc, ((0, 0), (1, Hp - H - 1), (1, Wp - W - 1), (0, 0)))
    Lp = Hq * Wq
    q = 2 // s
    Lpad = -(-(Lp + q) // 8) * 8            # room for the largest tap shift, 8-row aligned
    phases = []
    for di in range(s):
        for dj in range(s):
            p = xp[:, di::s, dj::s, :][:, :Hq, :Wq, :].reshape(B, Lp, C)
            phases.append(jnp.pad(p, ((0, 0), (0, Lpad - Lp), (0, 0))))
    return jnp.stack(phases, axis=1)        # (B, s*s, Lpad, C)


def _bn_fold(bn, eps=1e-5):
    scale = bn["gamma"] / jnp.sqrt(bn["var"] + eps)
    bias = bn["beta"] - bn["mean"] * scale
    return jnp.stack([scale, bias]).astype(jnp.float32)    # (2, C) packed scale/bias


def bottleneck_forward(params, x_nchw):
    """Forward pass of the PyTorch Bottleneck block (inference-mode BN); NCHW in, NCHW bf16 out."""
    s = params["stride"]
    x = jnp.transpose(x_nchw, (0, 2, 3, 1))                      # NCHW -> NHWC
    B, H, W, Cin = x.shape
    P = params["conv1"].shape[0]                                 # planes
    Cexp = params["conv3"].shape[0]                              # expansion * planes
    Ho = (H - 1) // s + 1
    Wo = (W - 1) // s + 1
    q = 2 // s
    Hq, Wq = Ho + q, Wo + q

    x_bf = x.astype(jnp.bfloat16)

    # conv1 (1x1) + bn1 + relu
    w1 = jnp.transpose(params["conv1"].reshape(P, Cin)).astype(jnp.bfloat16)
    h1 = pointwise_conv_bn_relu(x_bf.reshape(B * H * W, Cin), w1, _bn_fold(params["bn1"]))

    # stride-phase views of padded h1 (the only wrapper-side prep for conv2)
    ph = _stride_phases(h1.reshape(B, H, W, P), s=s, Hq=Hq, Wq=Wq)

    # conv2 weights: (Cout, Cin, 3, 3) -> (9, Cin, Cout), tap t = 3*i + j ; conv3: (Cin, Cout)
    w2 = jnp.transpose(params["conv2"], (2, 3, 1, 0)).reshape(9, P, P).astype(jnp.bfloat16)
    w3 = jnp.transpose(params["conv3"].reshape(Cexp, P)).astype(jnp.bfloat16)

    if "conv_sc" in params:   # projection shortcut: strided 1x1 conv + BN
        xs = x_bf[:, ::s, ::s, :][:, :Ho, :Wo, :].reshape(B, Ho * Wo, Cin)
        wsc = jnp.transpose(params["conv_sc"].reshape(Cexp, Cin)).astype(jnp.bfloat16)
        shortcut = ("proj", xs, wsc, _bn_fold(params["bn_sc"]))
    else:                     # identity shortcut (bf16 residual stream)
        shortcut = ("id", x_bf.reshape(B, H * W, Cin))

    out = conv2_conv3_shortcut(ph, w2, _bn_fold(params["bn2"]), w3, _bn_fold(params["bn3"]),
                               shortcut, s=s, Ho=Ho, Wo=Wo, Wq=Wq)
    out = out.reshape(B, Ho, Wo, Cexp)
    return jnp.transpose(out, (0, 3, 1, 2))                      # NHWC -> NCHW (bf16)


# ----------------------------------------------------------------------------
# Pure-JAX reference (bf16 conv operands / f32 accumulation, mirroring the kernels)
# ----------------------------------------------------------------------------
def _conv_ref(x_nhwc, w_oihw, stride, pad):
    return lax.conv_general_dilated(
        x_nhwc.astype(jnp.bfloat16), w_oihw.astype(jnp.bfloat16),
        window_strides=(stride, stride), padding=[(pad, pad), (pad, pad)],
        dimension_numbers=("NHWC", "OIHW", "NHWC"),
        preferred_element_type=jnp.float32)


def _bn_ref(x, bn, eps=1e-5):
    scale = bn["gamma"] / jnp.sqrt(bn["var"] + eps)
    return x * scale + (bn["beta"] - bn["mean"] * scale)


def bottleneck_reference(params, x_nchw):
    stride = params["stride"]
    x = jnp.transpose(x_nchw, (0, 2, 3, 1)).astype(jnp.float32)
    h = jnp.maximum(_bn_ref(_conv_ref(x, params["conv1"], 1, 0), params["bn1"]), 0.0)
    h = jnp.maximum(_bn_ref(_conv_ref(h, params["conv2"], stride, 1), params["bn2"]), 0.0)
    out = _bn_ref(_conv_ref(h, params["conv3"], 1, 0), params["bn3"])
    if "conv_sc" in params:
        out = out + _bn_ref(_conv_ref(x, params["conv_sc"], stride, 0), params["bn_sc"])
    else:
        out = out + x
    out = jnp.maximum(out, 0.0)
    return jnp.transpose(out, (0, 3, 1, 2))


# ----------------------------------------------------------------------------
# Deterministic parameter construction (shapes from Bottleneck.__init__)
# ----------------------------------------------------------------------------
def init_bottleneck_params(key, in_planes, planes, stride=1, expansion=4):
    def conv_w(k, cout, cin, ksz):
        fan_in = cin * ksz * ksz
        return jax.random.normal(k, (cout, cin, ksz, ksz), jnp.float32) * (2.0 / fan_in) ** 0.5

    def bn_p(k, c):
        k1, k2, k3, k4 = jax.random.split(k, 4)
        return dict(
            gamma=1.0 + 0.1 * jax.random.normal(k1, (c,), jnp.float32),
            beta=0.1 * jax.random.normal(k2, (c,), jnp.float32),
            mean=0.1 * jax.random.normal(k3, (c,), jnp.float32),
            var=1.0 + 0.1 * jax.random.uniform(k4, (c,), jnp.float32),
        )

    ks = iter(jax.random.split(key, 8))
    params = dict(
        stride=stride,
        conv1=conv_w(next(ks), planes, in_planes, 1),
        bn1=bn_p(next(ks), planes),
        conv2=conv_w(next(ks), planes, planes, 3),
        bn2=bn_p(next(ks), planes),
        conv3=conv_w(next(ks), expansion * planes, planes, 1),
        bn3=bn_p(next(ks), expansion * planes),
    )
    if stride != 1 or in_planes != expansion * planes:
        params["conv_sc"] = conv_w(next(ks), expansion * planes, in_planes, 1)
        params["bn_sc"] = bn_p(next(ks), expansion * planes)
    return params


# ----------------------------------------------------------------------------
if __name__ == "__main__":
    key = jax.random.PRNGKey(0)
    kp1, kx1, kp2, kx2 = jax.random.split(key, 4)

    # Case 1: projection shortcut (stride=2, in_planes != expansion*planes)
    params1 = init_bottleneck_params(kp1, in_planes=64, planes=32, stride=2)
    x1 = jax.random.normal(kx1, (2, 64, 16, 16), jnp.float32)
    out1 = jax.block_until_ready(bottleneck_forward(params1, x1))
    ref1 = bottleneck_reference(params1, x1)
    assert out1.shape == (2, 128, 8, 8), out1.shape
    assert bool(jnp.all(jnp.isfinite(out1.astype(jnp.float32))))
    assert bool(jnp.allclose(out1.astype(jnp.float32), ref1, atol=3e-2, rtol=3e-2)), \
        float(jnp.max(jnp.abs(out1.astype(jnp.float32) - ref1)))

    # Case 2: identity shortcut (stride=1, in_planes == expansion*planes)
    params2 = init_bottleneck_params(kp2, in_planes=128, planes=32, stride=1)
    x2 = jax.random.normal(kx2, (2, 128, 8, 8), jnp.float32)
    out2 = jax.block_until_ready(bottleneck_forward(params2, x2))
    ref2 = bottleneck_reference(params2, x2)
    assert out2.shape == (2, 128, 8, 8), out2.shape
    assert bool(jnp.all(jnp.isfinite(out2.astype(jnp.float32))))
    assert bool(jnp.allclose(out2.astype(jnp.float32), ref2, atol=3e-2, rtol=3e-2)), \
        float(jnp.max(jnp.abs(out2.astype(jnp.float32) - ref2)))

    print("KERNEL_OK")
</pallas_src>

<mosaic_0001>
module attributes {stable_mosaic.version = 11 : i64} {
  func.func @_mm_bn_relu_kernel(%arg0: i32, %arg1: memref<256x64xbf16, #tpu.memory_space<vmem>>, %arg2: memref<64x32xbf16, #tpu.memory_space<vmem>>, %arg3: memref<2x32xf32, #tpu.memory_space<vmem>>, %arg4: memref<256x32xbf16, #tpu.memory_space<vmem>>) attributes {dimension_semantics = [#tpu.dimension_semantics<parallel>], iteration_bounds = array<i64: 2>, scalar_prefetch = 0 : i64, scratch_operands = 0 : i64, tpu.core_type = #tpu.core_type<tc>, window_params = [{transform_indices = @transform_0, window_bounds = array<i64: 256, 64>}, {pipeline_mode = #tpu.pipeline_mode<synchronous>, transform_indices = @transform_1, window_bounds = array<i64: 64, 32>}, {pipeline_mode = #tpu.pipeline_mode<synchronous>, transform_indices = @transform_2, window_bounds = array<i64: 2, 32>}, {transform_indices = @transform_3, window_bounds = array<i64: 256, 32>}]} {
    %c0 = arith.constant 0 : index
    %c0_0 = arith.constant 0 : index
    %0 = vector.load %arg1[%c0, %c0_0] : memref<256x64xbf16, #tpu.memory_space<vmem>>, vector<256x64xbf16>
    %c0_1 = arith.constant 0 : index
    %c0_2 = arith.constant 0 : index
    %1 = vector.load %arg2[%c0_1, %c0_2] : memref<64x32xbf16, #tpu.memory_space<vmem>>, vector<64x32xbf16>
    %cst = arith.constant dense<0.000000e+00> : vector<256x32xf32>
    %2 = tpu.matmul %0, %1, %cst {dimension_numbers = #tpu.dot_dimension_numbers<[1], [0], [0], [1], [0, 0, 1, 1], [], []>} : vector<256x64xbf16>, vector<64x32xbf16>, vector<256x32xf32> -> vector<256x32xf32>
    %c0_3 = arith.constant 0 : index
    %c0_4 = arith.constant 0 : index
    %3 = vector.load %arg3[%c0_3, %c0_4] : memref<2x32xf32, #tpu.memory_space<vmem>>, vector<2x32xf32>
    %4 = vector.extract_strided_slice %3 {offsets = [0, 0], sizes = [1, 32], strides = [1, 1]} : vector<2x32xf32> to vector<1x32xf32>
    %5 = vector.broadcast %4 : vector<1x32xf32> to vector<256x32xf32>
    %6 = arith.mulf %2, %5 : vector<256x32xf32>
    %7 = vector.extract_strided_slice %3 {offsets = [1, 0], sizes = [1, 32], strides = [1, 1]} : vector<2x32xf32> to vector<1x32xf32>
    %8 = vector.broadcast %7 : vector<1x32xf32> to vector<256x32xf32>
    %9 = arith.addf %6, %8 : vector<256x32xf32>
    %cst_5 = arith.constant 0.000000e+00 : f32
    %10 = vector.broadcast %cst_5 : f32 to vector<256x32xf32>
    %11 = arith.maximumf %9, %10 : vector<256x32xf32>
    %12 = arith.truncf %11 : vector<256x32xf32> to vector<256x32xbf16>
    %c0_6 = arith.constant 0 : index
    %c0_7 = arith.constant 0 : index
    %13 = vector.load %arg4[%c0_6, %c0_7] : memref<256x32xbf16, #tpu.memory_space<vmem>>, vector<256x32xbf16>
    tpu.vector_store %arg4[%c0_6, %c0_7], %12 {strides = array<i32>} : memref<256x32xbf16, #tpu.memory_space<vmem>>, vector<256x32xbf16>,
    return
  }
  func.func @transform_0(%arg0: i32) -> (i32, i32) {
    %c0_i32 = arith.constant 0 : i32
    %c0_i32_0 = arith.constant 0 : i32
    return %arg0, %c0_i32 : i32, i32
  }
  func.func @transform_1(%arg0: i32) -> (i32, i32) {
    %c0_i32 = arith.constant 0 : i32
    %c0_i32_0 = arith.constant 0 : i32
    %c0_i32_1 = arith.constant 0 : i32
    return %c0_i32, %c0_i32_0 : i32, i32
  }
  func.func @transform_2(%arg0: i32) -> (i32, i32) {
    %c0_i32 = arith.constant 0 : i32
    %c0_i32_0 = arith.constant 0 : i32
    %c0_i32_1 = arith.constant 0 : i32
    return %c0_i32, %c0_i32_0 : i32, i32
  }
  func.func @transform_3(%arg0: i32) -> (i32, i32) {
    %c0_i32 = arith.constant 0 : i32
    %c0_i32_0 = arith.constant 0 : i32
    return %arg0, %c0_i32 : i32, i32
  }
}

</mosaic_0001>

<llo_original>
// kernel: tpu_custom_call.1
$region0: #{tpu_custom_call.1}
  #allocation0 [shape = 'u32[]', space=smem, size = 0x4, offset = 0x4, fixed_abs, tag = 'smem constant byte address 0x4 - core index']
  #allocation1 [shape = 'u32[144,128]{1,0:T(1,128)}', space=vmem, size = 0x12000, scoped, tag = 'internal scratch']
  %s0 = inlined_call_operand.vmem [shape: bf16[512,64], index: 0, kind: input, shape index: {}]
  %s1 = inlined_call_operand.vmem [shape: bf16[64,32], index: 1, kind: input, shape index: {}]
  %s2 = inlined_call_operand.vmem [shape: f32[2,32], index: 2, kind: input, shape index: {}]
  %s3 = inlined_call_operand.vmem [shape: bf16[512,32], index: 3, kind: output, shape index: {}]
  %s4 = sld [smem:[#allocation0]]
  $region45: #{tpu_custom_call.1} parent=0
    _
  %s6 = ssub.s32 1, %s4
  %s7 = scalar_select 0, %s6, %s4
  loop: start=0, step=1, limit=4
  $region2: #{tpu_custom_call.1} parent=0 // loop_pre_header
    _
  $region3: #{tpu_custom_call.1} parent=0 // loop_header
    %s9 = sphi 0, %s13
    %p10 = scmp.ge.s32.totalorder %s9, 4
    %s19 = sphi 0, %s21
    %s22 = sphi 0, %s19
    %s23 = sphi 0, %s22
    %s39 = sphi 0, %s23
    %s43 = sphi 0, %s43
    %s45 = sphi 0, %s43
    %s46 = sphi 0, %s45
    %s60 = sphi 0, %s46
    %s64 = sphi 0, %s64
    %s66 = sphi 0, %s64
    %s67 = sphi 0, %s66
    %s81 = sphi 0, %s67
    %s87 = sphi 0, %s89
    %s90 = sphi 0, %s87
    %s91 = sphi 0, %s90
    %s107 = sphi 0, %s91
  $region4: #{tpu_custom_call.1} parent=0 // loop_header_branch
    %12 = sbr.rel (%p10) target = $region8
  $region5: #{tpu_custom_call.1} parent=0 // loop_body
    %s14 = ssub.s32 %s9, 1
    %s15 = ssub.s32 %s9, 2
    %s16 = sadd.s32 %s9, 1
    %s17 = ssub.s32 %s9, %s16
    %p18 = scmp.eq.s32.totalorder %s17, 0
    %s20 = sadd.s32 %s19, 1
    %s21 = scalar_select %p18, %s19, %s20
    %p24 = pneg %p18
    %p25 = scmp.eq.s32.totalorder %s9, 1
    %p26 = por %p24, %p25
    %p27 = scmp.ne.s32.totalorder %s19, %s22
    %p28 = scmp.eq.s32.totalorder %s9, 0
    %p29 = por %p27, %p28
    %p30 = scmp.ne.s32.totalorder %s19, %s22
    %p31 = scmp.eq.s32.totalorder %s14, 1
    %p32 = por %p30, %p31
    %p33 = scmp.ne.s32.totalorder %s22, %s23
    %p34 = scmp.eq.s32.totalorder %s14, 0
    %p35 = por %p33, %p34
    %p36 = scmp.ne.s32.totalorder %s22, %s23
    %p37 = scmp.eq.s32.totalorder %s15, 1
    %p38 = por %p36, %p37
    %p40 = scmp.ne.s32.totalorder %s23, %s39
    %p41 = scmp.eq.s32.totalorder %s15, 0
    %p42 = por %p40, %p41
    %s44 = sadd.s32 %s43, 1
    %p47 = scmp.eq.s32.totalorder %s9, 1
    %p48 = scmp.ne.s32.totalorder %s43, %s45
    %p49 = scmp.eq.s32.totalorder %s9, 0
    %p50 = por %p48, %p49
    %p51 = scmp.ne.s32.totalorder %s43, %s45
    %p52 = scmp.eq.s32.totalorder %s14, 1
    %p53 = por %p51, %p52
    %p54 = scmp.ne.s32.totalorder %s45, %s46
    %p55 = scmp.eq.s32.totalorder %s14, 0
    %p56 = por %p54, %p55
    %p57 = scmp.ne.s32.totalorder %s45, %s46
    %p58 = scmp.eq.s32.totalorder %s15, 1
    %p59 = por %p57, %p58
    %p61 = scmp.ne.s32.totalorder %s46, %s60
    %p62 = scmp.eq.s32.totalorder %s15, 0
    %p63 = por %p61, %p62
    %s65 = sadd.s32 %s64, 1
    %p68 = scmp.eq.s32.totalorder %s9, 1
    %p69 = scmp.ne.s32.totalorder %s64, %s66
    %p70 = scmp.eq.s32.totalorder %s9, 0
    %p71 = por %p69, %p70
    %p72 = scmp.ne.s32.totalorder %s64, %s66
    %p73 = scmp.eq.s32.totalorder %s14, 1
    %p74 = por %p72, %p73
    %p75 = scmp.ne.s32.totalorder %s66, %s67
    %p76 = scmp.eq.s32.totalorder %s14, 0
    %p77 = por %p75, %p76
    %p78 = scmp.ne.s32.totalorder %s66, %s67
    %p79 = scmp.eq.s32.totalorder %s15, 1
    %p80 = por %p78, %p79
    %p82 = scmp.ne.s32.totalorder %s67, %s81
    %p83 = scmp.eq.s32.totalorder %s15, 0
    %p84 = por %p82, %p83
    %s85 = ssub.s32 %s9, %s16
    %p86 = scmp.eq.s32.totalorder %s85, 0
    %s88 = sadd.s32 %s87, 1
    %s89 = scalar_select %p86, %s87, %s88
    %p92 = pneg %p86
    %p93 = scmp.eq.s32.totalorder %s9, 1
    %p94 = por %p92, %p93
    %p95 = scmp.ne.s32.totalorder %s87, %s90
    %p96 = scmp.eq.s32.totalorder %s9, 0
    %p97 = por %p95, %p96
    %p98 = scmp.ne.s32.totalorder %s87, %s90
    %p99 = scmp.eq.s32.totalorder %s14, 1
    %p100 = por %p98, %p99
    %p101 = scmp.ne.s32.totalorder %s90, %s91
    %p102 = scmp.eq.s32.totalorder %s14, 0
    %p103 = por %p101, %p102
    %p104 = scmp.ne.s32.totalorder %s90, %s91
    %p105 = scmp.eq.s32.totalorder %s15, 1
    %p106 = por %p104, %p105
    %p108 = scmp.ne.s32.totalorder %s91, %s107
    %p109 = scmp.eq.s32.totalorder %s15, 0
    %p110 = por %p108, %p109
    %p111 = scmp.le.s32.totalorder 1, %s9
    %p112 = scmp.lt.s32.totalorder %s9, 3
    %p113 = pnand %p111, %p112
    %p114 = pneg %p113
    // Predicated region
    $region9: #{tpu_custom_call.1} parent=5 // pred_check
      _
    $region10: #{tpu_custom_call.1} parent=5 // pred_check_branch
      %116 = sbr.rel (%p113) target = $region12
    $region11: #{tpu_custom_call.1} parent=5 // pred_region
      %s117 = ssub.s32 %s9, 1
      // Predicated region
      $region13: #{tpu_custom_call.1} parent=11 // pred_check
        %p118 = pneg %p56
      $region14: #{tpu_custom_call.1} parent=11 // pred_check_branch
        %120 = sbr.rel (%p118) target = $region16
      $region15: #{tpu_custom_call.1} parent=11 // pred_region
        _
      $region16: #{tpu_custom_call.1} parent=11 // pred_fallthru
        _
      // Predicated region
      $region17: #{tpu_custom_call.1} parent=11 // pred_check
        %p121 = pneg %p77
      $region18: #{tpu_custom_call.1} parent=11 // pred_check_branch
        %123 = sbr.rel (%p121) target = $region20
      $region19: #{tpu_custom_call.1} parent=11 // pred_region
        _
      $region20: #{tpu_custom_call.1} parent=11 // pred_fallthru
        _
    $region12: #{tpu_custom_call.1} parent=5 // pred_fallthru
      _
    %p124 = scmp.lt.s32.totalorder %s9, 2
    // Predicated region
    $region21: #{tpu_custom_call.1} parent=5 // pred_check
      %p125 = pneg %p124
    $region22: #{tpu_custom_call.1} parent=5 // pred_check_branch
      %127 = sbr.rel (%p125) target = $region24
    $region23: #{tpu_custom_call.1} parent=5 // pred_region
      // Predicated region
      $region25: #{tpu_custom_call.1} parent=23 // pred_check
        %p128 = pneg %p29
      $region26: #{tpu_custom_call.1} parent=23 // pred_check_branch
        %130 = sbr.rel (%p128) target = $region28
      $region27: #{tpu_custom_call.1} parent=23 // pred_region
        %s131 = smul.u32 32, %s9
        %p132 = scmp.lt.s32.totalorder %s131, 63
        %s133 = scalar_select %p132, %s131, 63
        %s134 = smul.addr %s133, 4
        %s135 = scalar_lea.vmem %s0, %s134
        %s136 = smul.u32 32, %s9
      $region28: #{tpu_custom_call.1} parent=23 // pred_fallthru
        _
    $region24: #{tpu_custom_call.1} parent=5 // pred_fallthru
      _
    %p137 = scmp.le.s32.totalorder 1, %s9
    %p138 = scmp.lt.s32.totalorder %s9, 3
    %p139 = pnand %p137, %p138
    %p140 = pneg %p139
    // Predicated region
    $region29: #{tpu_custom_call.1} parent=5 // pred_check
      _
    $region30: #{tpu_custom_call.1} parent=5 // pred_check_branch
      %142 = sbr.rel (%p139) target = $region32
    $region31: #{tpu_custom_call.1} parent=5 // pred_region
      %s143 = ssub.s32 %s9, 1
      %s144 = smul.u32 32, %s14
      %p145 = scmp.lt.s32.totalorder %s144, 63
      %s146 = scalar_select %p145, %s144, 63
      %s147 = smul.addr %s146, 4
      %s148 = scalar_lea.vmem %s0, %s147
      %p149 = pneg %p35
      %p150 = pneg %p32
      %p151 = pneg %p56
      %p152 = pneg %p53
      %p153 = pneg %p77
      %p154 = pneg %p74
      %p155 = pneg %p103
      %p156 = pneg %p100
      %s157 = smul.u32 32, %s14
      %p158 = scmp.lt.s32.totalorder %s157, 63
      %s159 = scalar_select %p158, %s157, 63
      %s160 = smul.addr %s159, 4
      %s161 = scalar_lea.vmem %s3, %s160
      %s162 = smul.u32 32, %s14
      %p163 = scmp.lt.s32.totalorder %s162, 63
      %s164 = scalar_select %p163, %s162, 63
      %s165 = smul.addr %s164, 4
      %s166 = scalar_lea.vmem %s0, %s165
      %s167 = smul.u32 32, %s14
      %s168 = smul.u32 32, %s14
      %p169 = scmp.lt.s32.totalorder %s168, 63
      %s170 = scalar_select %p169, %s168, 63
      %s171 = smul.addr %s170, 4
      %s172 = scalar_lea.vmem %s3, %s171
      %s173 = smul.u32 32, %s14
      %v175 = vld [vmem:[%s166] sm:$0xf]
      %v176 = vld [vmem:[%s166 + $0x4] sm:$0xf]
      %v177 = vld [vmem:[%s166 + $0x8] sm:$0xf]
      %v178 = vld [vmem:[%s166 + $0xc] sm:$0xf]
      %v179 = vld [vmem:[%s166 + $0x10] sm:$0xf]
      %v180 = vld [vmem:[%s166 + $0x14] sm:$0xf]
      %v181 = vld [vmem:[%s166 + $0x18] sm:$0xf]
      %v182 = vld [vmem:[%s166 + $0x1c] sm:$0xf]
      %v183 = vld [vmem:[%s166 + $0x20] sm:$0xf]
      %v184 = vld [vmem:[%s166 + $0x24] sm:$0xf]
      %v185 = vld [vmem:[%s166 + $0x28] sm:$0xf]
      %v186 = vld [vmem:[%s166 + $0x2c] sm:$0xf]
      %v187 = vld [vmem:[%s166 + $0x30] sm:$0xf]
      %v188 = vld [vmem:[%s166 + $0x34] sm:$0xf]
      %v189 = vld [vmem:[%s166 + $0x38] sm:$0xf]
      %v190 = vld [vmem:[%s166 + $0x3c] sm:$0xf]
      %v191 = vld [vmem:[%s166 + $0x40] sm:$0xf]
      %v192 = vld [vmem:[%s166 + $0x44] sm:$0xf]
      %v193 = vld [vmem:[%s166 + $0x48] sm:$0xf]
      %v194 = vld [vmem:[%s166 + $0x4c] sm:$0xf]
      %v195 = vld [vmem:[%s166 + $0x50] sm:$0xf]
      %v196 = vld [vmem:[%s166 + $0x54] sm:$0xf]
      %v197 = vld [vmem:[%s166 + $0x58] sm:$0xf]
      %v198 = vld [vmem:[%s166 + $0x5c] sm:$0xf]
      %v199 = vld [vmem:[%s166 + $0x60] sm:$0xf]
      %v200 = vld [vmem:[%s166 + $0x64] sm:$0xf]
      %v201 = vld [vmem:[%s166 + $0x68] sm:$0xf]
      %v202 = vld [vmem:[%s166 + $0x6c] sm:$0xf]
      %v203 = vld [vmem:[%s166 + $0x70] sm:$0xf]
      %v204 = vld [vmem:[%s166 + $0x74] sm:$0xf]
      %v205 = vld [vmem:[%s166 + $0x78] sm:$0xf]
      %v206 = vld [vmem:[%s166 + $0x7c] sm:$0xf]
      %v207 = vld [vmem:[%s1] sm:$0xf]
      %v208 = vld [vmem:[%s1 + $0x4] sm:$0xf]
      %v209 = vld [vmem:[%s1 + $0x8] sm:$0xf]
      %v210 = vld [vmem:[%s1 + $0xc] sm:$0xf]
      %v211 = vld [vmem:[%s1 + $0x10] sm:$0xf]
      %v212 = vld [vmem:[%s1 + $0x14] sm:$0xf]
      %v213 = vld [vmem:[%s1 + $0x18] sm:$0xf]
      %v214 = vld [vmem:[%s1 + $0x1c] sm:$0xf]
      %v247 = vunpack.c.l.b16 %v175
      %v248 = vunpack.c.l.b16 %v176
      %v249 = vunpack.c.l.b16 %v177
      %v250 = vunpack.c.l.b16 %v178
      %v251 = vunpack.c.l.b16 %v179
      %v252 = vunpack.c.l.b16 %v180
      %v253 = vunpack.c.l.b16 %v181
      %v254 = vunpack.c.l.b16 %v182
      %v255 = vunpack.c.l.b16 %v183
      %v256 = vunpack.c.l.b16 %v184
      %v257 = vunpack.c.l.b16 %v185
      %v258 = vunpack.c.l.b16 %v186
      %v259 = vunpack.c.l.b16 %v187
      %v260 = vunpack.c.l.b16 %v188
      %v261 = vunpack.c.l.b16 %v189
      %v262 = vunpack.c.l.b16 %v190
      %v263 = vunpack.c.l.b16 %v191
      %v264 = vunpack.c.l.b16 %v192
      %v265 = vunpack.c.l.b16 %v193
      %v266 = vunpack.c.l.b16 %v194
      %v267 = vunpack.c.l.b16 %v195
      %v268 = vunpack.c.l.b16 %v196
      %v269 = vunpack.c.l.b16 %v197
      %v270 = vunpack.c.l.b16 %v198
      %v271 = vunpack.c.l.b16 %v199
      %v272 = vunpack.c.l.b16 %v200
      %v273 = vunpack.c.l.b16 %v201
      %v274 = vunpack.c.l.b16 %v202
      %v275 = vunpack.c.l.b16 %v203
      %v276 = vunpack.c.l.b16 %v204
      %v277 = vunpack.c.l.b16 %v205
      %v278 = vunpack.c.l.b16 %v206
      %v279 = vpack.c.b16 %v248, %v247
      %v280 = vpack.c.b16 %v250, %v249
      %v281 = vpack.c.b16 %v252, %v251
      %v282 = vpack.c.b16 %v254, %v253
      %v283 = vpack.c.b16 %v256, %v255
      %v284 = vpack.c.b16 %v258, %v257
      %v285 = vpack.c.b16 %v260, %v259
      %v286 = vpack.c.b16 %v262, %v261
      %v287 = vpack.c.b16 %v264, %v263
      %v288 = vpack.c.b16 %v266, %v265
      %v289 = vpack.c.b16 %v268, %v267
      %v290 = vpack.c.b16 %v270, %v269
      %v291 = vpack.c.b16 %v272, %v271
      %v292 = vpack.c.b16 %v274, %v273
      %v293 = vpack.c.b16 %v276, %v275
      %v294 = vpack.c.b16 %v278, %v277
      %v303 = vunpack.c.l.b16 %v207
      %v304 = vunpack.c.l.b16 %v208
      %v305 = vunpack.c.l.b16 %v209
      %v306 = vunpack.c.l.b16 %v210
      %v307 = vunpack.c.l.b16 %v211
      %v308 = vunpack.c.l.b16 %v212
      %v309 = vunpack.c.l.b16 %v213
      %v310 = vunpack.c.l.b16 %v214
      %v311 = vpack.c.b16 %v304, %v303
      %v312 = vpack.c.b16 %v306, %v305
      %v313 = vpack.c.b16 %v308, %v307
      %v314 = vpack.c.b16 %v310, %v309
      %vm319 = vcmask 523264
      %v321 = vsel %vm319, %v279, 0
      %v324 = vsel %vm319, %v280, 0
      %v327 = vsel %vm319, %v281, 0
      %v330 = vsel %vm319, %v282, 0
      %v333 = vsel %vm319, %v283, 0
      %v336 = vsel %vm319, %v284, 0
      %v339 = vsel %vm319, %v285, 0
      %v342 = vsel %vm319, %v286, 0
      %v345 = vsel %vm319, %v287, 0
      %v348 = vsel %vm319, %v288, 0
      %v351 = vsel %vm319, %v289, 0
      %v354 = vsel %vm319, %v290, 0
      %v357 = vsel %vm319, %v291, 0
      %v360 = vsel %vm319, %v292, 0
      %v363 = vsel %vm319, %v293, 0
      %v366 = vsel %vm319, %v294, 0
      %368 = vmatprep.subr.bf16.mxu0 0
      %369 = vmatpush1.bf16.msra.mxu0 0
      %370 = vmatprep.subr.bf16.mxu0 0
      %371 = vmatpush1.bf16.msra.mxu0 0
      %372 = vmatprep.subr.bf16.mxu0 0
      %373 = vmatpush1.bf16.msra.mxu0 0
      %374 = vmatprep.subr.bf16.mxu0 0
      %375 = vmatpush1.bf16.msra.mxu0 0
      %376 = vmatprep.subr.bf16.mxu0 0
      %377 = vmatpush1.bf16.msra.mxu0 %v314
      %378 = vmatprep.subr.bf16.mxu0 0
      %379 = vmatpush1.bf16.msra.mxu0 %v313
      %380 = vmatprep.subr.bf16.mxu0 0
      %381 = vmatpush1.bf16.msra.mxu0 %v312
      %382 = vmatprep.subr.bf16.mxu0 0
      %383 = vmatpush1.bf16.msra.mxu0 %v311
      %384 = vmatprep.subr.bf16.mxu0 0
      %385 = vmatpush2.bf16.msra.mxu0 0
      %386 = vmatprep.subr.bf16.mxu0 0
      %387 = vmatpush2.bf16.msra.mxu0 0
      %388 = vmatprep.subr.bf16.mxu0 0
      %389 = vmatpush2.bf16.msra.mxu0 0
      %390 = vmatprep.subr.bf16.mxu0 0
      %391 = vmatpush2.bf16.msra.mxu0 0
      %392 = vmatprep.subr.bf16.mxu0 0
      %393 = vmatpush2.bf16.msra.mxu0 0
      %394 = vmatprep.subr.bf16.mxu0 0
      %395 = vmatpush2.bf16.msra.mxu0 0
      %396 = vmatprep.subr.bf16.mxu0 0
      %397 = vmatpush2.bf16.msra.mxu0 0
      %398 = vmatprep.subr.bf16.mxu0 0
      %399 = vmatpush2.bf16.msra.mxu0 0
      %400 = vmatprep.mubr.bf16.mxu0 0
      %401 = vmatmul.mubr.bf16.gmra.mxu0 %v321
      %v402 = vpop.f32.mrf.mxu0
      %v403 = vadd.f32 0.0, %v402
      %v404 = vpop.f32.mrf.mxu0
      %v405 = vpop.f32.mrf.mxu0
      %v406 = vadd.f32 0.0, %v405
      %v407 = vpop.f32.mrf.mxu0
      %408 = vmatprep.mubr.bf16.mxu0 0
      %409 = vmatmul.mubr.bf16.gmra.mxu0 %v324
      %v410 = vpop.f32.mrf.mxu0
      %v411 = vadd.f32 0.0, %v410
      %v412 = vpop.f32.mrf.mxu0
      %v413 = vpop.f32.mrf.mxu0
      %v414 = vadd.f32 0.0, %v413
      %v415 = vpop.f32.mrf.mxu0
      %416 = vmatprep.mubr.bf16.mxu0 0
      %417 = vmatmul.mubr.bf16.gmra.mxu0 %v327
      %v418 = vpop.f32.mrf.mxu0
      %v419 = vadd.f32 0.0, %v418
      %v420 = vpop.f32.mrf.mxu0
      %v421 = vpop.f32.mrf.mxu0
      %v422 = vadd.f32 0.0, %v421
      %v423 = vpop.f32.mrf.mxu0
      %424 = vmatprep.mubr.bf16.mxu0 0
      %425 = vmatmul.mubr.bf16.gmra.mxu0 %v330
      %v426 = vpop.f32.mrf.mxu0
      %v427 = vadd.f32 0.0, %v426
      %v428 = vpop.f32.mrf.mxu0
      %v429 = vpop.f32.mrf.mxu0
      %v430 = vadd.f32 0.0, %v429
      %v431 = vpop.f32.mrf.mxu0
      %432 = vmatprep.mubr.bf16.mxu0 0
      %433 = vmatmul.mubr.bf16.gmra.mxu0 %v333
      %v434 = vpop.f32.mrf.mxu0
      %v435 = vadd.f32 0.0, %v434
      %v436 = vpop.f32.mrf.mxu0
      %v437 = vpop.f32.mrf.mxu0
      %v438 = vadd.f32 0.0, %v437
      %v439 = vpop.f32.mrf.mxu0
      %440 = vmatprep.mubr.bf16.mxu0 0
      %441 = vmatmul.mubr.bf16.gmra.mxu0 %v336
      %v442 = vpop.f32.mrf.mxu0
      %v443 = vadd.f32 0.0, %v442
      %v444 = vpop.f32.mrf.mxu0
      %v445 = vpop.f32.mrf.mxu0
      %v446 = vadd.f32 0.0, %v445
      %v447 = vpop.f32.mrf.mxu0
      %448 = vmatprep.mubr.bf16.mxu0 0
      %449 = vmatmul.mubr.bf16.gmra.mxu0 %v339
      %v450 = vpop.f32.mrf.mxu0
      %v451 = vadd.f32 0.0, %v450
      %v452 = vpop.f32.mrf.mxu0
      %v453 = vpop.f32.mrf.mxu0
      %v454 = vadd.f32 0.0, %v453
      %v455 = vpop.f32.mrf.mxu0
      %456 = vmatprep.mubr.bf16.mxu0 0
      %457 = vmatmul.mubr.bf16.gmra.mxu0 %v342
      %v458 = vpop.f32.mrf.mxu0
      %v459 = vadd.f32 0.0, %v458
      %v460 = vpop.f32.mrf.mxu0
      %v461 = vpop.f32.mrf.mxu0
      %v462 = vadd.f32 0.0, %v461
      %v463 = vpop.f32.mrf.mxu0
      %464 = vmatprep.mubr.bf16.mxu0 0
      %465 = vmatmul.mubr.bf16.gmra.mxu0 %v345
      %v466 = vpop.f32.mrf.mxu0
      %v467 = vadd.f32 0.0, %v466
      %v468 = vpop.f32.mrf.mxu0
      %v469 = vpop.f32.mrf.mxu0
      %v470 = vadd.f32 0.0, %v469
      %v471 = vpop.f32.mrf.mxu0
      %472 = vmatprep.mubr.bf16.mxu0 0
      %473 = vmatmul.mubr.bf16.gmra.mxu0 %v348
      %v474 = vpop.f32.mrf.mxu0
      %v475 = vadd.f32 0.0, %v474
      %v476 = vpop.f32.mrf.mxu0
      %v477 = vpop.f32.mrf.mxu0
      %v478 = vadd.f32 0.0, %v477
      %v479 = vpop.f32.mrf.mxu0
      %480 = vmatprep.mubr.bf16.mxu0 0
      %481 = vmatmul.mubr.bf16.gmra.mxu0 %v351
      %v482 = vpop.f32.mrf.mxu0
      %v483 = vadd.f32 0.0, %v482
      %v484 = vpop.f32.mrf.mxu0
      %v485 = vpop.f32.mrf.mxu0
      %v486 = vadd.f32 0.0, %v485
      %v487 = vpop.f32.mrf.mxu0
      %488 = vmatprep.mubr.bf16.mxu0 0
      %489 = vmatmul.mubr.bf16.gmra.mxu0 %v354
      %v490 = vpop.f32.mrf.mxu0
      %v491 = vadd.f32 0.0, %v490
      %v492 = vpop.f32.mrf.mxu0
      %v493 = vpop.f32.mrf.mxu0
      %v494 = vadd.f32 0.0, %v493
      %v495 = vpop.f32.mrf.mxu0
      %496 = vmatprep.mubr.bf16.mxu0 0
      %497 = vmatmul.mubr.bf16.gmra.mxu0 %v357
      %v498 = vpop.f32.mrf.mxu0
      %v499 = vadd.f32 0.0, %v498
      %v500 = vpop.f32.mrf.mxu0
      %v501 = vpop.f32.mrf.mxu0
      %v502 = vadd.f32 0.0, %v501
      %v503 = vpop.f32.mrf.mxu0
      %504 = vmatprep.mubr.bf16.mxu0 0
      %505 = vmatmul.mubr.bf16.gmra.mxu0 %v360
      %v506 = vpop.f32.mrf.mxu0
      %v507 = vadd.f32 0.0, %v506
      %v508 = vpop.f32.mrf.mxu0
      %v509 = vpop.f32.mrf.mxu0
      %v510 = vadd.f32 0.0, %v509
      %v511 = vpop.f32.mrf.mxu0
      %512 = vmatprep.mubr.bf16.mxu0 0
      %513 = vmatmul.mubr.bf16.gmra.mxu0 %v363
      %v514 = vpop.f32.mrf.mxu0
      %v515 = vadd.f32 0.0, %v514
      %v516 = vpop.f32.mrf.mxu0
      %v517 = vpop.f32.mrf.mxu0
      %v518 = vadd.f32 0.0, %v517
      %v519 = vpop.f32.mrf.mxu0
      %520 = vmatprep.mubr.bf16.mxu0 0
      %521 = vmatmul.mubr.bf16.gmra.mxu0 %v366
      %v522 = vpop.f32.mrf.mxu0
      %v523 = vadd.f32 0.0, %v522
      %v524 = vpop.f32.mrf.mxu0
      %v525 = vpop.f32.mrf.mxu0
      %v526 = vadd.f32 0.0, %v525
      %v527 = vpop.f32.mrf.mxu0
      %528 = vdwg.mxu0
      %v529 = vld [vmem:[%s2] sm:$0x3]
      %v530 = vlaneseq
      %v531 = vshrl.u32 %v530, 7
      %v532 = vsub.s32 0, %v531
      %v533 = vrot.slane %v529, %v532
      %v534 = vmul.f32 %v403, %v533
      %v535 = vmul.f32 %v406, %v533
      %v536 = vmul.f32 %v411, %v533
      %v537 = vmul.f32 %v414, %v533
      %v538 = vmul.f32 %v419, %v533
      %v539 = vmul.f32 %v422, %v533
      %v540 = vmul.f32 %v427, %v533
      %v541 = vmul.f32 %v430, %v533
      %v542 = vmul.f32 %v435, %v533
      %v543 = vmul.f32 %v438, %v533
      %v544 = vmul.f32 %v443, %v533
      %v545 = vmul.f32 %v446, %v533
      %v546 = vmul.f32 %v451, %v533
      %v547 = vmul.f32 %v454, %v533
      %v548 = vmul.f32 %v459, %v533
      %v549 = vmul.f32 %v462, %v533
      %v550 = vmul.f32 %v467, %v533
      %v551 = vmul.f32 %v470, %v533
      %v552 = vmul.f32 %v475, %v533
      %v553 = vmul.f32 %v478, %v533
      %v554 = vmul.f32 %v483, %v533
      %v555 = vmul.f32 %v486, %v533
      %v556 = vmul.f32 %v491, %v533
      %v557 = vmul.f32 %v494, %v533
      %v558 = vmul.f32 %v499, %v533
      %v559 = vmul.f32 %v502, %v533
      %v560 = vmul.f32 %v507, %v533
      %v561 = vmul.f32 %v510, %v533
      %v562 = vmul.f32 %v515, %v533
      %v563 = vmul.f32 %v518, %v533
      %v564 = vmul.f32 %v523, %v533
      %v565 = vmul.f32 %v526, %v533
      %v566 = vlaneseq
      %v567 = vshrl.u32 %v566, 7
      %v568 = vsub.s32 1, %v567
      %v569 = vrot.slane %v529, %v568
      %v570 = vadd.f32 %v534, %v569
      %v571 = vadd.f32 %v535, %v569
      %v572 = vadd.f32 %v536, %v569
      %v573 = vadd.f32 %v537, %v569
      %v574 = vadd.f32 %v538, %v569
      %v575 = vadd.f32 %v539, %v569
      %v576 = vadd.f32 %v540, %v569
      %v577 = vadd.f32 %v541, %v569
      %v578 = vadd.f32 %v542, %v569
      %v579 = vadd.f32 %v543, %v569
      %v580 = vadd.f32 %v544, %v569
      %v581 = vadd.f32 %v545, %v569
      %v582 = vadd.f32 %v546, %v569
      %v583 = vadd.f32 %v547, %v569
      %v584 = vadd.f32 %v548, %v569
      %v585 = vadd.f32 %v549, %v569
      %v586 = vadd.f32 %v550, %v569
      %v587 = vadd.f32 %v551, %v569
      %v588 = vadd.f32 %v552, %v569
      %v589 = vadd.f32 %v553, %v569
      %v590 = vadd.f32 %v554, %v569
      %v591 = vadd.f32 %v555, %v569
      %v592 = vadd.f32 %v556, %v569
      %v593 = vadd.f32 %v557, %v569
      %v594 = vadd.f32 %v558, %v569
      %v595 = vadd.f32 %v559, %v569
      %v596 = vadd.f32 %v560, %v569
      %v597 = vadd.f32 %v561, %v569
      %v598 = vadd.f32 %v562, %v569
      %v599 = vadd.f32 %v563, %v569
      %v600 = vadd.f32 %v564, %v569
      %v601 = vadd.f32 %v565, %v569
      %v602 = vmax.f32 %v570, 0.0
      %v603 = vmax.f32 %v571, 0.0
      %v604 = vmax.f32 %v572, 0.0
      %v605 = vmax.f32 %v573, 0.0
      %v606 = vmax.f32 %v574, 0.0
      %v607 = vmax.f32 %v575, 0.0
      %v608 = vmax.f32 %v576, 0.0
      %v609 = vmax.f32 %v577, 0.0
      %v610 = vmax.f32 %v578, 0.0
      %v611 = vmax.f32 %v579, 0.0
      %v612 = vmax.f32 %v580, 0.0
      %v613 = vmax.f32 %v581, 0.0
      %v614 = vmax.f32 %v582, 0.0
      %v615 = vmax.f32 %v583, 0.0
      %v616 = vmax.f32 %v584, 0.0
      %v617 = vmax.f32 %v585, 0.0
      %v618 = vmax.f32 %v586, 0.0
      %v619 = vmax.f32 %v587, 0.0
      %v620 = vmax.f32 %v588, 0.0
      %v621 = vmax.f32 %v589, 0.0
      %v622 = vmax.f32 %v590, 0.0
      %v623 = vmax.f32 %v591, 0.0
      %v624 = vmax.f32 %v592, 0.0
      %v625 = vmax.f32 %v593, 0.0
      %v626 = vmax.f32 %v594, 0.0
      %v627 = vmax.f32 %v595, 0.0
      %v628 = vmax.f32 %v596, 0.0
      %v629 = vmax.f32 %v597, 0.0
      %v630 = vmax.f32 %v598, 0.0
      %v631 = vmax.f32 %v599, 0.0
      %v632 = vmax.f32 %v600, 0.0
      %v633 = vmax.f32 %v601, 0.0
      %v634 = vpack.c.bf16 %v603, %v602
      %v635 = vpack.c.bf16 %v605, %v604
      %v636 = vpack.c.bf16 %v607, %v606
      %v637 = vpack.c.bf16 %v609, %v608
      %v638 = vpack.c.bf16 %v611, %v610
      %v639 = vpack.c.bf16 %v613, %v612
      %v640 = vpack.c.bf16 %v615, %v614
      %v641 = vpack.c.bf16 %v617, %v616
      %v642 = vpack.c.bf16 %v619, %v618
      %v643 = vpack.c.bf16 %v621, %v620
      %v644 = vpack.c.bf16 %v623, %v622
      %v645 = vpack.c.bf16 %v625, %v624
      %v646 = vpack.c.bf16 %v627, %v626
      %v647 = vpack.c.bf16 %v629, %v628
      %v648 = vpack.c.bf16 %v631, %v630
      %v649 = vpack.c.bf16 %v633, %v632
      %v666 = vunpack.c.l.b16 %v634
      %v667 = vunpack.c.h.b16 %v634
      %v668 = vunpack.c.l.b16 %v635
      %v669 = vunpack.c.h.b16 %v635
      %v670 = vunpack.c.l.b16 %v636
      %v671 = vunpack.c.h.b16 %v636
      %v672 = vunpack.c.l.b16 %v637
      %v673 = vunpack.c.h.b16 %v637
      %v674 = vunpack.c.l.b16 %v638
      %v675 = vunpack.c.h.b16 %v638
      %v676 = vunpack.c.l.b16 %v639
      %v677 = vunpack.c.h.b16 %v639
      %v678 = vunpack.c.l.b16 %v640
      %v679 = vunpack.c.h.b16 %v640
      %v680 = vunpack.c.l.b16 %v641
      %v681 = vunpack.c.h.b16 %v641
      %v682 = vunpack.c.l.b16 %v642
      %v683 = vunpack.c.h.b16 %v642
      %v684 = vunpack.c.l.b16 %v643
      %v685 = vunpack.c.h.b16 %v643
      %v686 = vunpack.c.l.b16 %v644
      %v687 = vunpack.c.h.b16 %v644
      %v688 = vunpack.c.l.b16 %v645
      %v689 = vunpack.c.h.b16 %v645
      %v690 = vunpack.c.l.b16 %v646
      %v691 = vunpack.c.h.b16 %v646
      %v692 = vunpack.c.l.b16 %v647
      %v693 = vunpack.c.h.b16 %v647
      %v694 = vunpack.c.l.b16 %v648
      %v695 = vunpack.c.h.b16 %v648
      %v696 = vunpack.c.l.b16 %v649
      %v697 = vunpack.c.h.b16 %v649
      %v698 = vpack.c.b16 %v666, %v666
      %v699 = vpack.c.b16 %v667, %v667
      %v700 = vpack.c.b16 %v668, %v668
      %v701 = vpack.c.b16 %v669, %v669
      %v702 = vpack.c.b16 %v670, %v670
      %v703 = vpack.c.b16 %v671, %v671
      %v704 = vpack.c.b16 %v672, %v672
      %v705 = vpack.c.b16 %v673, %v673
      %v706 = vpack.c.b16 %v674, %v674
      %v707 = vpack.c.b16 %v675, %v675
      %v708 = vpack.c.b16 %v676, %v676
      %v709 = vpack.c.b16 %v677, %v677
      %v710 = vpack.c.b16 %v678, %v678
      %v711 = vpack.c.b16 %v679, %v679
      %v712 = vpack.c.b16 %v680, %v680
      %v713 = vpack.c.b16 %v681, %v681
      %v714 = vpack.c.b16 %v682, %v682
      %v715 = vpack.c.b16 %v683, %v683
      %v716 = vpack.c.b16 %v684, %v684
      %v717 = vpack.c.b16 %v685, %v685
      %v718 = vpack.c.b16 %v686, %v686
      %v719 = vpack.c.b16 %v687, %v687
      %v720 = vpack.c.b16 %v688, %v688
      %v721 = vpack.c.b16 %v689, %v689
      %v722 = vpack.c.b16 %v690, %v690
      %v723 = vpack.c.b16 %v691, %v691
      %v724 = vpack.c.b16 %v692, %v692
      %v725 = vpack.c.b16 %v693, %v693
      %v726 = vpack.c.b16 %v694, %v694
      %v727 = vpack.c.b16 %v695, %v695
      %v728 = vpack.c.b16 %v696, %v696
      %v729 = vpack.c.b16 %v697, %v697
      %vm762 = vcmask 257024
      %763 = vst.msk [vmem:[%s172] sm:$0xf] %vm762, %v698
      %764 = vst.msk [vmem:[%s172 + $0x4] sm:$0xf] %vm762, %v699
      %765 = vst.msk [vmem:[%s172 + $0x8] sm:$0xf] %vm762, %v700
      %766 = vst.msk [vmem:[%s172 + $0xc] sm:$0xf] %vm762, %v701
      %767 = vst.msk [vmem:[%s172 + $0x10] sm:$0xf] %vm762, %v702
      %768 = vst.msk [vmem:[%s172 + $0x14] sm:$0xf] %vm762, %v703
      %769 = vst.msk [vmem:[%s172 + $0x18] sm:$0xf] %vm762, %v704
      %770 = vst.msk [vmem:[%s172 + $0x1c] sm:$0xf] %vm762, %v705
      %771 = vst.msk [vmem:[%s172 + $0x20] sm:$0xf] %vm762, %v706
      %772 = vst.msk [vmem:[%s172 + $0x24] sm:$0xf] %vm762, %v707
      %773 = vst.msk [vmem:[%s172 + $0x28] sm:$0xf] %vm762, %v708
      %774 = vst.msk [vmem:[%s172 + $0x2c] sm:$0xf] %vm762, %v709
      %775 = vst.msk [vmem:[%s172 + $0x30] sm:$0xf] %vm762, %v710
      %776 = vst.msk [vmem:[%s172 + $0x34] sm:$0xf] %vm762, %v711
      %777 = vst.msk [vmem:[%s172 + $0x38] sm:$0xf] %vm762, %v712
      %778 = vst.msk [vmem:[%s172 + $0x3c] sm:$0xf] %vm762, %v713
      %779 = vst.msk [vmem:[%s172 + $0x40] sm:$0xf] %vm762, %v714
      %780 = vst.msk [vmem:[%s172 + $0x44] sm:$0xf] %vm762, %v715
      %781 = vst.msk [vmem:[%s172 + $0x48] sm:$0xf] %vm762, %v716
      %782 = vst.msk [vmem:[%s172 + $0x4c] sm:$0xf] %vm762, %v717
      %783 = vst.msk [vmem:[%s172 + $0x50] sm:$0xf] %vm762, %v718
      %784 = vst.msk [vmem:[%s172 + $0x54] sm:$0xf] %vm762, %v719
      %785 = vst.msk [vmem:[%s172 + $0x58] sm:$0xf] %vm762, %v720
      %786 = vst.msk [vmem:[%s172 + $0x5c] sm:$0xf] %vm762, %v721
      %787 = vst.msk [vmem:[%s172 + $0x60] sm:$0xf] %vm762, %v722
      %788 = vst.msk [vmem:[%s172 + $0x64] sm:$0xf] %vm762, %v723
      %789 = vst.msk [vmem:[%s172 + $0x68] sm:$0xf] %vm762, %v724
      %790 = vst.msk [vmem:[%s172 + $0x6c] sm:$0xf] %vm762, %v725
      %791 = vst.msk [vmem:[%s172 + $0x70] sm:$0xf] %vm762, %v726
      %792 = vst.msk [vmem:[%s172 + $0x74] sm:$0xf] %vm762, %v727
      %793 = vst.msk [vmem:[%s172 + $0x78] sm:$0xf] %vm762, %v728
      %794 = vst.msk [vmem:[%s172 + $0x7c] sm:$0xf] %vm762, %v729
      %s795 = smul.u32 32, %s14
      %p796 = scmp.lt.s32.totalorder %s795, 63
      %s797 = scalar_select %p796, %s795, 63
      %s798 = smul.addr %s797, 4
      %s799 = scalar_lea.vmem %s3, %s798
      // Predicated region
      $region33: #{tpu_custom_call.1} parent=31 // pred_check
        %p800 = pneg %p100
      $region34: #{tpu_custom_call.1} parent=31 // pred_check_branch
        %802 = sbr.rel (%p800) target = $region36
      $region35: #{tpu_custom_call.1} parent=31 // pred_region
        %s803 = smul.u32 32, %s14
      $region36: #{tpu_custom_call.1} parent=31 // pred_fallthru
        _
    $region32: #{tpu_custom_call.1} parent=5 // pred_fallthru
      _
    %p804 = scmp.le.s32.totalorder 2, %s9
    // Predicated region
    $region37: #{tpu_custom_call.1} parent=5 // pred_check
      %p805 = pneg %p804
    $region38: #{tpu_custom_call.1} parent=5 // pred_check_branch
      %807 = sbr.rel (%p805) target = $region40
    $region39: #{tpu_custom_call.1} parent=5 // pred_region
      %s808 = ssub.s32 %s9, 2
      // Predicated region
      $region41: #{tpu_custom_call.1} parent=39 // pred_check
        %p809 = pneg %p106
      $region42: #{tpu_custom_call.1} parent=39 // pred_check_branch
        %811 = sbr.rel (%p809) target = $region44
      $region43: #{tpu_custom_call.1} parent=39 // pred_region
        %s812 = smul.u32 32, %s15
        %p813 = scmp.lt.s32.totalorder %s812, 63
        %s814 = scalar_select %p813, %s812, 63
        %s815 = smul.addr %s814, 4
        %s816 = scalar_lea.vmem %s3, %s815
      $region44: #{tpu_custom_call.1} parent=39 // pred_fallthru
        _
    $region40: #{tpu_custom_call.1} parent=5 // pred_fallthru
      _
  $region6: #{tpu_custom_call.1} parent=0 // loop_footer
    %s13 = sadd.s32 1, %s9
  $region7: #{tpu_custom_call.1} parent=0 // loop_footer_branch
    %8 = sbr.rel target = $region3
  $region8: #{tpu_custom_call.1} parent=0 // loop_exit
    _

</llo_original>
